<compile_context>
chip_gen: v7x
topology: tpu7x:2x2x1
jax: 0.10.0
libtpu: 0.0.40
codegen_flags: <defaults>
</compile_context>

<pallas_src>
import functools

import jax
import jax.numpy as jnp
from jax.experimental import pallas as pl
from jax.experimental.pallas import tpu as pltpu


def attention_kernel(s_ref, join_ref, ws_t_ref, wj_t_ref, v_ref, out_ref,
                     att_ref, s_proj_ref, *, ew_dtype):
    # s_ref      : [tb, H]        f32
    # join_ref   : [lc, tb, H]    bf16  (native seq-first layout, L-chunk x batch tile)
    # ws_t_ref   : [H, H]         bf16  (= attn.weight[:, :H].T)
    # wj_t_ref   : [H, H]         bf16  (= attn.weight[:, H:].T)
    # v_ref      : [1, H]         f32   (= v.weight)
    # out_ref    : [n_l, lc, tb]  f32   (batch tile on the lane axis)
    # att_ref    : [n_l, lc, tb]  f32   scratch, persists across the L grid axis
    # s_proj_ref : [tb, H]        f32   scratch, computed once per batch tile
    l = pl.program_id(1)
    n_l = pl.num_programs(1)
    lc, tb, H = join_ref.shape

    # s projection depends only on the batch tile -> compute once (hoisted out of L loop).
    @pl.when(l == 0)
    def _():
        s_proj_ref[...] = jnp.dot(s_ref[...].astype(jnp.bfloat16), ws_t_ref[...],
                                  preferred_element_type=jnp.float32)

    # One flattened [lc*tb, H] @ [H, H] MXU matmul for this L-chunk, f32 accumulate.
    j_proj = jnp.dot(join_ref[...].reshape(lc * tb, H), wj_t_ref[...],
                     preferred_element_type=jnp.float32).reshape(lc, tb, H)

    # energy / v-projection: VPU + EUP(tanh) + reduce over H; no MXU pass for the N=1 proj.
    pre = j_proj + s_proj_ref[...][None, :, :]                       # [lc, tb, H] f32
    energy = jnp.tanh(pre.astype(ew_dtype))                          # bf16 on v6e/v7x
    prod = (energy * v_ref[...].astype(ew_dtype)).astype(jnp.float32)
    att_ref[l] = jnp.sum(prod, axis=-1)                              # [lc, tb] logits

    # Softmax over src_len once every L-chunk of this batch tile has been processed.
    @pl.when(l == n_l - 1)
    def _():
        a = att_ref[...]                                             # [n_l, lc, tb]
        m = jnp.max(a, axis=(0, 1), keepdims=True)
        e = jnp.exp(a - m)
        denom = jnp.sum(e, axis=(0, 1), keepdims=True)
        out_ref[...] = e / denom          # exact divide: rows sum to 1 (fixes prev failure)


def _default_elementwise_dtype():
    """bf16 tanh/VPU path on v6e/v7x (bf16 EUP/VPU); f32 on v5e / unknown backends."""
    try:
        kind = jax.devices()[0].device_kind.lower()
    except Exception:
        return jnp.float32
    if "v6" in kind or "v7" in kind or "tpu7" in kind:
        return jnp.bfloat16
    return jnp.float32


def _choose_tiles(B, L, H):
    """Pick (batch_tile tb, L_chunk lc).

    VMEM per join element resident per grid step:
      bf16 join block x2 pipeline buffers (4 B) + f32 j_proj (4 B)
      + f32 pre-activation (4 B) + tanh output (<=4 B) + fusion slack (2 B)  ~= 18 B
    plus resident out/att buffers, s (x2 buffers), s_proj scratch and weights.
    Budgeted at 16 MiB (fits v5e's 16 MiB default scoped VMEM; ~2x headroom under
    the explicit 32 MiB vmem_limit on v6e / v7x's 64 MiB part).
    """
    BYTES_PER_JOIN_ELEM = 18
    BUDGET = 16 * 1024 * 1024

    def fixed_bytes(tb):
        return ((L * tb * 4) * 3            # att scratch + out block + softmax temps
                + tb * H * 4 * 3            # s block (x2 buffers) + s_proj scratch
                + 2 * H * H * 2 + H * 4)    # bf16 weights + f32 v

    def per_l_bytes(tb):
        return tb * H * BYTES_PER_JOIN_ELEM + tb * 4

    # Batch tile: full B, or a multiple of 128 (lane axis of the output block).
    if B <= 256:
        tb = B
    else:
        half = pl.cdiv(B, 2)                       # >=2 tiles -> both v7x TCs get work
        tb = min(1024, pl.cdiv(half, 128) * 128)   # >=512 lanes ~85% of HBM roofline
    if tb % 128 == 0:
        while tb > 128 and fixed_bytes(tb) + per_l_bytes(tb) > BUDGET:
            tb -= 128                              # shrink before relying on headroom

    # L chunk: largest divisor of L whose intermediates fit the remaining budget
    # (divisor => the [n_l, lc, tb] logit buffer maps 1:1 onto the L rows).
    avail = max(BUDGET - fixed_bytes(tb), per_l_bytes(tb))
    lc_target = max(1, min(L, avail // per_l_bytes(tb)))
    lc = max(d for d in range(1, L + 1) if L % d == 0 and d <= lc_target)

    # Guarantee >=2 grid steps so the join DMA overlaps compute (double buffering),
    # unless that would explode the step count (prime-ish L).
    if pl.cdiv(B, tb) * (L // lc) < 2 and L > 1:
        d = max(d for d in range(1, L) if L % d == 0)
        if L // d <= 8:
            lc = d
    return tb, lc


def attention_forward(s, join, attn_weight, v_weight, elementwise_dtype=None):
    """s: [B, H]; join: [L, B, H]; attn_weight: [H, 2H]; v_weight: [1, H].
    Returns softmax attention weights [B, L] (matches the PyTorch module)."""
    L, B, H = join.shape
    assert s.shape == (B, H)
    if elementwise_dtype is None:
        elementwise_dtype = _default_elementwise_dtype()

    # Split + pre-transpose the (tiny) weights; do this once at model setup in real use.
    ws_t = attn_weight[:, :H].T.astype(jnp.bfloat16)   # [H, H]
    wj_t = attn_weight[:, H:].T.astype(jnp.bfloat16)   # [H, H]
    v_row = v_weight.astype(jnp.float32).reshape(1, H)

    # bf16 join at the HBM boundary (bandwidth-bound kernel). In a real model the
    # producer should emit bf16 directly; this cast stands in for that.
    join_bf = join.astype(jnp.bfloat16)
    s_f32 = s.astype(jnp.float32)

    tb, lc = _choose_tiles(B, L, H)
    n_b = pl.cdiv(B, tb)
    n_l = L // lc
    grid = (n_b, n_l)

    kernel = functools.partial(attention_kernel, ew_dtype=elementwise_dtype)

    cost = pl.CostEstimate(
        flops=2 * L * B * H * H + 2 * B * H * H + 2 * L * B * H + 5 * L * B,
        transcendentals=L * B * H + L * B,
        bytes_accessed=2 * L * B * H + 4 * B * H + 4 * L * B + 2 * (2 * H * H) + 4 * H,
    )

    out3d = pl.pallas_call(
        kernel,
        out_shape=jax.ShapeDtypeStruct((n_l, lc, B), jnp.float32),
        grid=grid,
        in_specs=[
            pl.BlockSpec((tb, H), lambda i, l: (i, 0)),          # s: batch tile
            pl.BlockSpec((lc, tb, H), lambda i, l: (l, i, 0)),   # join: L-chunk x batch tile
            pl.BlockSpec((H, H), lambda i, l: (0, 0)),           # ws_t: resident
            pl.BlockSpec((H, H), lambda i, l: (0, 0)),           # wj_t: resident
            pl.BlockSpec((1, H), lambda i, l: (0, 0)),           # v:    resident
        ],
        out_specs=pl.BlockSpec((n_l, lc, tb), lambda i, l: (0, 0, i)),  # resident across l
        scratch_shapes=[
            pltpu.VMEM((n_l, lc, tb), jnp.float32),   # attention logits per batch tile
            pltpu.VMEM((tb, H), jnp.float32),         # s_proj (computed once per tile)
        ],
        compiler_params=pltpu.CompilerParams(
            dimension_semantics=("parallel", "arbitrary"),
            vmem_limit_bytes=32 * 1024 * 1024,
        ),
        cost_estimate=cost,
    )(s_f32, join_bf, ws_t, wj_t, v_row)

    # [n_l, lc, B] -> [L, B] -> [B, L]; tiny vs the join traffic.
    return out3d.reshape(L, B).T


def attention_ref(s, join, attn_weight, v_weight):
    """Pure-JAX f32 reference mirroring the PyTorch forward."""
    L, B, H = join.shape
    s_rep = jnp.broadcast_to(s[:, None, :], (B, L, H))
    join_bt = jnp.transpose(join, (1, 0, 2))
    cat = jnp.concatenate([s_rep, join_bt], axis=2)                 # [B, L, 2H]
    energy = jnp.tanh(cat @ attn_weight.T)                          # [B, L, H]
    att = (energy @ v_weight.T)[..., 0]                             # [B, L]
    return jax.nn.softmax(att, axis=1)


if __name__ == "__main__":
    B, L, H = 2, 8, 32  # batch, src_len, hid_dim

    key = jax.random.PRNGKey(0)
    k_s, k_j, k_w, k_v = jax.random.split(key, 4)

    s = jax.random.normal(k_s, (B, H), dtype=jnp.float32)
    join = jax.random.normal(k_j, (L, B, H), dtype=jnp.float32)

    # deterministic parameter init (nn.Linear-like scale)
    attn_weight = jax.random.uniform(
        k_w, (H, 2 * H), minval=-1.0, maxval=1.0, dtype=jnp.float32) / jnp.sqrt(2.0 * H)
    v_weight = jax.random.uniform(
        k_v, (1, H), minval=-1.0, maxval=1.0, dtype=jnp.float32) / jnp.sqrt(1.0 * H)

    out = attention_forward(s, join, attn_weight, v_weight)
    out = jax.block_until_ready(out)

    ref = attention_ref(s, join, attn_weight, v_weight)
    assert out.shape == (B, L)
    # bf16 join / bf16 MXU operands (and bf16 tanh on v6e/v7x) -> relaxed elementwise tol.
    assert jnp.allclose(out, ref, atol=3e-2, rtol=3e-2), "mismatch vs reference"
    # exact (non-approx) softmax divide -> rows are proper probabilities
    assert jnp.allclose(jnp.sum(out, axis=1), jnp.ones((B,)), atol=1e-3)

    print("KERNEL_OK")
</pallas_src>

<mosaic_0001>
module attributes {stable_mosaic.version = 11 : i64} {
  func.func @attention_kernel(%arg0: i32, %arg1: i32, %arg2: memref<2x32xf32, #tpu.memory_space<vmem>>, %arg3: memref<4x2x32xbf16, #tpu.memory_space<vmem>>, %arg4: memref<32x32xbf16, #tpu.memory_space<vmem>>, %arg5: memref<32x32xbf16, #tpu.memory_space<vmem>>, %arg6: memref<1x32xf32, #tpu.memory_space<vmem>>, %arg7: memref<2x4x2xf32, #tpu.memory_space<vmem>>, %arg8: memref<2x4x2xf32, #tpu.memory_space<vmem>>, %arg9: memref<2x32xf32, #tpu.memory_space<vmem>>) attributes {dimension_semantics = [#tpu.dimension_semantics<parallel>, #tpu.dimension_semantics<arbitrary>], iteration_bounds = array<i64: 1, 2>, scalar_prefetch = 0 : i64, scratch_operands = 2 : i64, tpu.core_type = #tpu.core_type<tc>, window_params = [{transform_indices = @transform_0, window_bounds = array<i64: 2, 32>}, {transform_indices = @transform_1, window_bounds = array<i64: 4, 2, 32>}, {pipeline_mode = #tpu.pipeline_mode<synchronous>, transform_indices = @transform_2, window_bounds = array<i64: 32, 32>}, {pipeline_mode = #tpu.pipeline_mode<synchronous>, transform_indices = @transform_3, window_bounds = array<i64: 32, 32>}, {pipeline_mode = #tpu.pipeline_mode<synchronous>, transform_indices = @transform_4, window_bounds = array<i64: 1, 32>}, {transform_indices = @transform_5, window_bounds = array<i64: 2, 4, 2>}]} {
    %c0_i32 = arith.constant 0 : i32
    %0 = arith.cmpi eq, %arg1, %c0_i32 : i32
    %1 = arith.extui %0 : i1 to i32
    %c0_i32_0 = arith.constant 0 : i32
    %2 = arith.cmpi ne, %1, %c0_i32_0 : i32
    scf.if %2 {
      %c0_13 = arith.constant 0 : index
      %c0_14 = arith.constant 0 : index
      %25 = vector.load %arg2[%c0_13, %c0_14] : memref<2x32xf32, #tpu.memory_space<vmem>>, vector<2x32xf32>
      %26 = arith.truncf %25 : vector<2x32xf32> to vector<2x32xbf16>
      %c0_15 = arith.constant 0 : index
      %c0_16 = arith.constant 0 : index
      %27 = vector.load %arg4[%c0_15, %c0_16] : memref<32x32xbf16, #tpu.memory_space<vmem>>, vector<32x32xbf16>
      %cst_17 = arith.constant dense<0.000000e+00> : vector<2x32xf32>
      %28 = tpu.matmul %26, %27, %cst_17 {dimension_numbers = #tpu.dot_dimension_numbers<[1], [0], [0], [1], [0, 0, 1, 1], [], []>} : vector<2x32xbf16>, vector<32x32xbf16>, vector<2x32xf32> -> vector<2x32xf32>
      %c0_18 = arith.constant 0 : index
      %c0_19 = arith.constant 0 : index
      %29 = vector.load %arg9[%c0_18, %c0_19] : memref<2x32xf32, #tpu.memory_space<vmem>>, vector<2x32xf32>
      tpu.vector_store %arg9[%c0_18, %c0_19], %28 {strides = array<i32>} : memref<2x32xf32, #tpu.memory_space<vmem>>, vector<2x32xf32>,
    } else {
    }
    %c0 = arith.constant 0 : index
    %c0_1 = arith.constant 0 : index
    %c0_2 = arith.constant 0 : index
    %3 = vector.load %arg3[%c0, %c0_1, %c0_2] : memref<4x2x32xbf16, #tpu.memory_space<vmem>>, vector<4x2x32xbf16>
    %4 = vector.shape_cast %3 : vector<4x2x32xbf16> to vector<8x32xbf16>
    %c0_3 = arith.constant 0 : index
    %c0_4 = arith.constant 0 : index
    %5 = vector.load %arg5[%c0_3, %c0_4] : memref<32x32xbf16, #tpu.memory_space<vmem>>, vector<32x32xbf16>
    %cst = arith.constant dense<0.000000e+00> : vector<8x32xf32>
    %6 = tpu.matmul %4, %5, %cst {dimension_numbers = #tpu.dot_dimension_numbers<[1], [0], [0], [1], [0, 0, 1, 1], [], []>} : vector<8x32xbf16>, vector<32x32xbf16>, vector<8x32xf32> -> vector<8x32xf32>
    %7 = vector.shape_cast %6 : vector<8x32xf32> to vector<4x2x32xf32>
    %c0_5 = arith.constant 0 : index
    %c0_6 = arith.constant 0 : index
    %8 = vector.load %arg9[%c0_5, %c0_6] : memref<2x32xf32, #tpu.memory_space<vmem>>, vector<2x32xf32>
    %9 = vector.shape_cast %8 : vector<2x32xf32> to vector<1x2x32xf32>
    %10 = vector.broadcast %9 : vector<1x2x32xf32> to vector<4x2x32xf32>
    %11 = arith.addf %7, %10 : vector<4x2x32xf32>
    %12 = math.tanh %11 : vector<4x2x32xf32>
    %c0_7 = arith.constant 0 : index
    %c0_8 = arith.constant 0 : index
    %13 = vector.load %arg6[%c0_7, %c0_8] : memref<1x32xf32, #tpu.memory_space<vmem>>, vector<1x32xf32>
    %14 = vector.shape_cast %13 : vector<1x32xf32> to vector<1x1x32xf32>
    %15 = vector.broadcast %14 : vector<1x1x32xf32> to vector<4x2x32xf32>
    %16 = arith.mulf %12, %15 : vector<4x2x32xf32>
    %cst_9 = arith.constant dense<0.000000e+00> : vector<4x2xf32>
    %17 = vector.multi_reduction <add>, %16, %cst_9 [2] : vector<4x2x32xf32> to vector<4x2xf32>
    %18 = arith.index_cast %arg1 : i32 to index
    %c0_10 = arith.constant 0 : index
    %c0_11 = arith.constant 0 : index
    %19 = vector.load %arg8[%18, %c0_10, %c0_11] : memref<2x4x2xf32, #tpu.memory_space<vmem>>, vector<1x4x2xf32>
    %20 = vector.shape_cast %19 : vector<1x4x2xf32> to vector<4x2xf32>
    %21 = vector.shape_cast %17 : vector<4x2xf32> to vector<1x4x2xf32>
    tpu.vector_store %arg8[%18, %c0_10, %c0_11], %21 {strides = array<i32>} : memref<2x4x2xf32, #tpu.memory_space<vmem>>, vector<1x4x2xf32>,
    %c1_i32 = arith.constant 1 : i32
    %22 = arith.cmpi eq, %arg1, %c1_i32 : i32
    %23 = arith.extui %22 : i1 to i32
    %c0_i32_12 = arith.constant 0 : i32
    %24 = arith.cmpi ne, %23, %c0_i32_12 : i32
    scf.if %24 {
      %c0_13 = arith.constant 0 : index
      %c0_14 = arith.constant 0 : index
      %c0_15 = arith.constant 0 : index
      %25 = vector.load %arg8[%c0_13, %c0_14, %c0_15] : memref<2x4x2xf32, #tpu.memory_space<vmem>>, vector<2x4x2xf32>
      %cst_16 = arith.constant dense<0xFF800000> : vector<2xf32>
      %26 = vector.multi_reduction <maximumf>, %25, %cst_16 [0, 1] : vector<2x4x2xf32> to vector<2xf32>
      %27 = vector.shape_cast %26 : vector<2xf32> to vector<1x1x2xf32>
      %28 = vector.broadcast %27 : vector<1x1x2xf32> to vector<2x4x2xf32>
      %29 = arith.subf %25, %28 : vector<2x4x2xf32>
      %30 = math.exp %29 : vector<2x4x2xf32>
      %cst_17 = arith.constant dense<0.000000e+00> : vector<2xf32>
      %31 = vector.multi_reduction <add>, %30, %cst_17 [0, 1] : vector<2x4x2xf32> to vector<2xf32>
      %32 = vector.shape_cast %31 : vector<2xf32> to vector<1x1x2xf32>
      %33 = vector.broadcast %32 : vector<1x1x2xf32> to vector<2x4x2xf32>
      %34 = arith.divf %30, %33 : vector<2x4x2xf32>
      %c0_18 = arith.constant 0 : index
      %c0_19 = arith.constant 0 : index
      %c0_20 = arith.constant 0 : index
      %35 = vector.load %arg7[%c0_18, %c0_19, %c0_20] : memref<2x4x2xf32, #tpu.memory_space<vmem>>, vector<2x4x2xf32>
      tpu.vector_store %arg7[%c0_18, %c0_19, %c0_20], %34 {strides = array<i32>} : memref<2x4x2xf32, #tpu.memory_space<vmem>>, vector<2x4x2xf32>,
    } else {
    }
    return
  }
  func.func @transform_0(%arg0: i32, %arg1: i32) -> (i32, i32) {
    %c0_i32 = arith.constant 0 : i32
    %c0_i32_0 = arith.constant 0 : i32
    return %arg0, %c0_i32 : i32, i32
  }
  func.func @transform_1(%arg0: i32, %arg1: i32) -> (i32, i32, i32) {
    %c0_i32 = arith.constant 0 : i32
    %c0_i32_0 = arith.constant 0 : i32
    return %arg1, %arg0, %c0_i32 : i32, i32, i32
  }
  func.func @transform_2(%arg0: i32, %arg1: i32) -> (i32, i32) {
    %c0_i32 = arith.constant 0 : i32
    %c0_i32_0 = arith.constant 0 : i32
    %c0_i32_1 = arith.constant 0 : i32
    return %c0_i32, %c0_i32_0 : i32, i32
  }
  func.func @transform_3(%arg0: i32, %arg1: i32) -> (i32, i32) {
    %c0_i32 = arith.constant 0 : i32
    %c0_i32_0 = arith.constant 0 : i32
    %c0_i32_1 = arith.constant 0 : i32
    return %c0_i32, %c0_i32_0 : i32, i32
  }
  func.func @transform_4(%arg0: i32, %arg1: i32) -> (i32, i32) {
    %c0_i32 = arith.constant 0 : i32
    %c0_i32_0 = arith.constant 0 : i32
    %c0_i32_1 = arith.constant 0 : i32
    return %c0_i32, %c0_i32_0 : i32, i32
  }
  func.func @transform_5(%arg0: i32, %arg1: i32) -> (i32, i32, i32) {
    %c0_i32 = arith.constant 0 : i32
    %c0_i32_0 = arith.constant 0 : i32
    %c0_i32_1 = arith.constant 0 : i32
    return %c0_i32, %c0_i32_0, %arg0 : i32, i32, i32
  }
}

</mosaic_0001>

<llo_original>
// kernel: tpu_custom_call.1
$region0: #{tpu_custom_call.1}
  #allocation0 [shape = 'u32[]', space=smem, size = 0x4, offset = 0x4, fixed_abs, tag = 'smem constant byte address 0x4 - core index']
  #allocation1 [shape = 'u32[144,128]{1,0:T(1,128)}', space=vmem, size = 0x12000, scoped, tag = 'internal scratch']
  #allocation2 [shape = 'f32[2,4,2]{2,1,0:T(4,128)}', space=vmem, size = 0x1000, scoped, tag = 'scratch operand']
  #allocation3 [shape = 'f32[2,32]{1,0:T(2,128)}', space=vmem, size = 0x400, scoped, tag = 'scratch operand']
  %s0 = inlined_call_operand.hbm [shape: f32[2,32], index: 0, kind: input, shape index: {}]
  %s1 = inlined_call_operand.hbm [shape: bf16[8,2,32], index: 1, kind: input, shape index: {}]
  %s2 = inlined_call_operand.hbm [shape: bf16[32,32], index: 2, kind: input, shape index: {}]
  %s3 = inlined_call_operand.hbm [shape: bf16[32,32], index: 3, kind: input, shape index: {}]
  %s4 = inlined_call_operand.vmem [shape: f32[1,32], index: 4, kind: input, shape index: {}]
  %s5 = inlined_call_operand.vmem [shape: f32[2,4,2], index: 5, kind: output, shape index: {}]
  %s6 = sld [smem:[#allocation0]]
  $region77: #{tpu_custom_call.1} parent=0
    _
  %s8 = ssub.s32 1, %s6
  %s9 = scalar_select 0, %s8, %s6
  $region1: #{tpu_custom_call.1} parent=0
    #allocation4 [shape = 'u8[1024]{0}', space=vmem, size = 0x400, scoped, tag = 'input window, operand 0, single buffered']
    #allocation5 [shape = 's32[2]{0}', space=sflag, size = 0x8, scoped, tag = 'scoped memory for tpu_custom_call.1']
    #allocation6 [shape = 'u8[4096]{0}', space=vmem, size = 0x1000, scoped, tag = 'input window, operand 1']
    #allocation7 [shape = 's32[2]{0}', space=sflag, size = 0x8, scoped, tag = 'scoped memory for tpu_custom_call.1']
    #allocation8 [shape = 'u8[8192]{0}', space=vmem, size = 0x2000, scoped, tag = 'input window, operand 2, single buffered']
    #allocation9 [shape = 'u8[8192]{0}', space=vmem, size = 0x2000, scoped, tag = 'input window, operand 3, single buffered']
    #allocation10 [shape = 's32[1]{0}', space=sflag, size = 0x4, scoped, tag = 'scoped memory for tpu_custom_call.1']
    %10 = vsyncpa [#allocation5], 0
    %11 = vsyncpa [#allocation7], 0
    %s12 = scalar_lea.sflag [#allocation7], 1
    %13 = vsyncpa %s12, 0
    %14 = vsyncpa [#allocation10], 0
    loop: start=0, step=1, limit=4
    $region2: #{tpu_custom_call.1} parent=1 // loop_pre_header
      _
    $region3: #{tpu_custom_call.1} parent=1 // loop_header
      %s16 = sphi 0, %s20
      %p17 = scmp.ge.s32.totalorder %s16, 4
      %s23 = sphi 0, %s35
      %s24 = sphi 0, %s31
      %s25 = sphi 0, %s23
      %s26 = sphi 0, %s24
      %s27 = sphi 0, %s25
      %s28 = sphi 0, %s26
      %s38 = sphi 0, %s40
      %s41 = sphi 0, %s38
      %s42 = sphi 0, %s41
      %s58 = sphi 0, %s42
      %s66 = sphi 0, %s68
      %s69 = sphi 0, %s66
      %s70 = sphi 0, %s69
      %s86 = sphi 0, %s70
      %s90 = sphi 0, %s90
      %s92 = sphi 0, %s90
      %s93 = sphi 0, %s92
      %s107 = sphi 0, %s93
      %s111 = sphi 0, %s111
      %s113 = sphi 0, %s111
      %s114 = sphi 0, %s113
      %s128 = sphi 0, %s114
      %s132 = sphi 0, %s132
      %s134 = sphi 0, %s132
      %s135 = sphi 0, %s134
      %s149 = sphi 0, %s135
      %s155 = sphi 0, %s157
      %s158 = sphi 0, %s155
      %s159 = sphi 0, %s158
      %s175 = sphi 0, %s159
    $region4: #{tpu_custom_call.1} parent=1 // loop_header_branch
      %19 = sbr.rel (%p17) target = $region8
    $region5: #{tpu_custom_call.1} parent=1 // loop_body
      %s21 = ssub.s32 %s16, 1
      %s22 = ssub.s32 %s16, 2
      %s29 = sadd.s32 1, %s24
      %p30 = scmp.ge.s32.totalorder %s29, 2
      %s31 = scalar_select %p30, 0, %s29
      %s32 = sadd.s32 1, %s23
      %s33 = scalar_select %p30, %s32, %s23
      %p34 = scmp.ge.s32.totalorder %s33, 1
      %s35 = scalar_select %p34, 0, %s33
      %s36 = ssub.s32 %s23, %s35
      %p37 = scmp.eq.s32.totalorder %s36, 0
      %s39 = sadd.s32 %s38, 1
      %s40 = scalar_select %p37, %s38, %s39
      %p43 = pneg %p37
      %p44 = scmp.eq.s32.totalorder %s16, 1
      %p45 = por %p43, %p44
      %p46 = scmp.ne.s32.totalorder %s38, %s41
      %p47 = scmp.eq.s32.totalorder %s16, 0
      %p48 = por %p46, %p47
      %p49 = scmp.ne.s32.totalorder %s38, %s41
      %p50 = scmp.eq.s32.totalorder %s21, 1
      %p51 = por %p49, %p50
      %p52 = scmp.ne.s32.totalorder %s41, %s42
      %p53 = scmp.eq.s32.totalorder %s21, 0
      %p54 = por %p52, %p53
      %p55 = scmp.ne.s32.totalorder %s41, %s42
      %p56 = scmp.eq.s32.totalorder %s22, 1
      %p57 = por %p55, %p56
      %p59 = scmp.ne.s32.totalorder %s42, %s58
      %p60 = scmp.eq.s32.totalorder %s22, 0
      %p61 = por %p59, %p60
      %s62 = ssub.s32 %s24, %s31
      %s63 = ssub.s32 %s23, %s35
      %s64 = sor.u32 %s62, %s63
      %p65 = scmp.eq.s32.totalorder %s64, 0
      %s67 = sadd.s32 %s66, 1
      %s68 = scalar_select %p65, %s66, %s67
      %p71 = pneg %p65
      %p72 = scmp.eq.s32.totalorder %s16, 1
      %p73 = por %p71, %p72
      %p74 = scmp.ne.s32.totalorder %s66, %s69
      %p75 = scmp.eq.s32.totalorder %s16, 0
      %p76 = por %p74, %p75
      %p77 = scmp.ne.s32.totalorder %s66, %s69
      %p78 = scmp.eq.s32.totalorder %s21, 1
      %p79 = por %p77, %p78
      %p80 = scmp.ne.s32.totalorder %s69, %s70
      %p81 = scmp.eq.s32.totalorder %s21, 0
      %p82 = por %p80, %p81
      %p83 = scmp.ne.s32.totalorder %s69, %s70
      %p84 = scmp.eq.s32.totalorder %s22, 1
      %p85 = por %p83, %p84
      %p87 = scmp.ne.s32.totalorder %s70, %s86
      %p88 = scmp.eq.s32.totalorder %s22, 0
      %p89 = por %p87, %p88
      %s91 = sadd.s32 %s90, 1
      %p94 = scmp.eq.s32.totalorder %s16, 1
      %p95 = scmp.ne.s32.totalorder %s90, %s92
      %p96 = scmp.eq.s32.totalorder %s16, 0
      %p97 = por %p95, %p96
      %p98 = scmp.ne.s32.totalorder %s90, %s92
      %p99 = scmp.eq.s32.totalorder %s21, 1
      %p100 = por %p98, %p99
      %p101 = scmp.ne.s32.totalorder %s92, %s93
      %p102 = scmp.eq.s32.totalorder %s21, 0
      %p103 = por %p101, %p102
      %p104 = scmp.ne.s32.totalorder %s92, %s93
      %p105 = scmp.eq.s32.totalorder %s22, 1
      %p106 = por %p104, %p105
      %p108 = scmp.ne.s32.totalorder %s93, %s107
      %p109 = scmp.eq.s32.totalorder %s22, 0
      %p110 = por %p108, %p109
      %s112 = sadd.s32 %s111, 1
      %p115 = scmp.eq.s32.totalorder %s16, 1
      %p116 = scmp.ne.s32.totalorder %s111, %s113
      %p117 = scmp.eq.s32.totalorder %s16, 0
      %p118 = por %p116, %p117
      %p119 = scmp.ne.s32.totalorder %s111, %s113
      %p120 = scmp.eq.s32.totalorder %s21, 1
      %p121 = por %p119, %p120
      %p122 = scmp.ne.s32.totalorder %s113, %s114
      %p123 = scmp.eq.s32.totalorder %s21, 0
      %p124 = por %p122, %p123
      %p125 = scmp.ne.s32.totalorder %s113, %s114
      %p126 = scmp.eq.s32.totalorder %s22, 1
      %p127 = por %p125, %p126
      %p129 = scmp.ne.s32.totalorder %s114, %s128
      %p130 = scmp.eq.s32.totalorder %s22, 0
      %p131 = por %p129, %p130
      %s133 = sadd.s32 %s132, 1
      %p136 = scmp.eq.s32.totalorder %s16, 1
      %p137 = scmp.ne.s32.totalorder %s132, %s134
      %p138 = scmp.eq.s32.totalorder %s16, 0
      %p139 = por %p137, %p138
      %p140 = scmp.ne.s32.totalorder %s132, %s134
      %p141 = scmp.eq.s32.totalorder %s21, 1
      %p142 = por %p140, %p141
      %p143 = scmp.ne.s32.totalorder %s134, %s135
      %p144 = scmp.eq.s32.totalorder %s21, 0
      %p145 = por %p143, %p144
      %p146 = scmp.ne.s32.totalorder %s134, %s135
      %p147 = scmp.eq.s32.totalorder %s22, 1
      %p148 = por %p146, %p147
      %p150 = scmp.ne.s32.totalorder %s135, %s149
      %p151 = scmp.eq.s32.totalorder %s22, 0
      %p152 = por %p150, %p151
      %s153 = ssub.s32 %s23, %s35
      %p154 = scmp.eq.s32.totalorder %s153, 0
      %s156 = sadd.s32 %s155, 1
      %s157 = scalar_select %p154, %s155, %s156
      %p160 = pneg %p154
      %p161 = scmp.eq.s32.totalorder %s16, 1
      %p162 = por %p160, %p161
      %p163 = scmp.ne.s32.totalorder %s155, %s158
      %p164 = scmp.eq.s32.totalorder %s16, 0
      %p165 = por %p163, %p164
      %p166 = scmp.ne.s32.totalorder %s155, %s158
      %p167 = scmp.eq.s32.totalorder %s21, 1
      %p168 = por %p166, %p167
      %p169 = scmp.ne.s32.totalorder %s158, %s159
      %p170 = scmp.eq.s32.totalorder %s21, 0
      %p171 = por %p169, %p170
      %p172 = scmp.ne.s32.totalorder %s158, %s159
      %p173 = scmp.eq.s32.totalorder %s22, 1
      %p174 = por %p172, %p173
      %p176 = scmp.ne.s32.totalorder %s159, %s175
      %p177 = scmp.eq.s32.totalorder %s22, 0
      %p178 = por %p176, %p177
      %p179 = scmp.le.s32.totalorder 1, %s16
      %p180 = scmp.lt.s32.totalorder %s16, 3
      %p181 = pnand %p179, %p180
      %p182 = pneg %p181
      // Predicated region
      $region9: #{tpu_custom_call.1} parent=5 // pred_check
        _
      $region10: #{tpu_custom_call.1} parent=5 // pred_check_branch
        %184 = sbr.rel (%p181) target = $region12
      $region11: #{tpu_custom_call.1} parent=5 // pred_region
        %s185 = ssub.s32 %s16, 1
        // Predicated region
        $region13: #{tpu_custom_call.1} parent=11 // pred_check
          %p186 = pneg %p54
        $region14: #{tpu_custom_call.1} parent=11 // pred_check_branch
          %188 = sbr.rel (%p186) target = $region16
        $region15: #{tpu_custom_call.1} parent=11 // pred_region
          %s190 = ssub.s32 32, 32
          %191 = vsyncadd [#allocation5], %s190
          %s192 = smul.addr %s25, 32
          %s193 = scalar_lea.hbm %s0, %s192
          %s195 = sshll.u32 [#allocation4], 4
          %s196 = int_to_ptr.vmem [resolvable:$true] %s195
          %198 = dma.hbm_to_vmem [thread:$0]  %s193, 32, %s196, [#allocation5]
        $region16: #{tpu_custom_call.1} parent=11 // pred_fallthru
          _
        // Predicated region
        $region17: #{tpu_custom_call.1} parent=11 // pred_check
          %p199 = pneg %p103
        $region18: #{tpu_custom_call.1} parent=11 // pred_check_branch
          %201 = sbr.rel (%p199) target = $region20
        $region19: #{tpu_custom_call.1} parent=11 // pred_region
          %s203 = ssub.s32 256, 256
          %204 = vsyncadd [#allocation7], %s203
          %s205 = sshll.u32 [#allocation8], 4
          %s206 = int_to_ptr.vmem [resolvable:$true] %s205
          %211 = dma.hbm_to_vmem [thread:$0]  %s2, 256, %s206, [#allocation7], 64, 64, 4
        $region20: #{tpu_custom_call.1} parent=11 // pred_fallthru
          _
        // Predicated region
        $region21: #{tpu_custom_call.1} parent=11 // pred_check
          %p212 = pneg %p124
        $region22: #{tpu_custom_call.1} parent=11 // pred_check_branch
          %214 = sbr.rel (%p212) target = $region24
        $region23: #{tpu_custom_call.1} parent=11 // pred_region
          %s216 = ssub.s32 256, 256
          %217 = vsyncadd [#allocation10], %s216
          %s218 = sshll.u32 [#allocation9], 4
          %s219 = int_to_ptr.vmem [resolvable:$true] %s218
          %224 = dma.hbm_to_vmem [thread:$0]  %s3, 256, %s219, [#allocation10], 64, 64, 4
        $region24: #{tpu_custom_call.1} parent=11 // pred_fallthru
          _
        // Predicated region
        $region25: #{tpu_custom_call.1} parent=11 // pred_check
          %p225 = pneg %p145
        $region26: #{tpu_custom_call.1} parent=11 // pred_check_branch
          %227 = sbr.rel (%p225) target = $region28
        $region27: #{tpu_custom_call.1} parent=11 // pred_region
          _
        $region28: #{tpu_custom_call.1} parent=11 // pred_fallthru
          _
      $region12: #{tpu_custom_call.1} parent=5 // pred_fallthru
        _
      %p228 = scmp.lt.s32.totalorder %s16, 2
      // Predicated region
      $region29: #{tpu_custom_call.1} parent=5 // pred_check
        %p229 = pneg %p228
      $region30: #{tpu_custom_call.1} parent=5 // pred_check_branch
        %231 = sbr.rel (%p229) target = $region32
      $region31: #{tpu_custom_call.1} parent=5 // pred_region
        // Predicated region
        $region33: #{tpu_custom_call.1} parent=31 // pred_check
          %p232 = pneg %p76
        $region34: #{tpu_custom_call.1} parent=31 // pred_check_branch
          %234 = sbr.rel (%p232) target = $region36
        $region35: #{tpu_custom_call.1} parent=31 // pred_region
          %s235 = sand.u32 %s16, 1
          %s236 = scalar_lea.sflag [#allocation7], %s235
          %s237 = sand.u32 %s66, 1
          %s238 = smul.addr %s237, 4
          %s239 = scalar_lea.vmem [#allocation6], %s238
          %s240 = smul.u32 4, %s24
          %s242 = ssub.s32 64, 64
          %243 = vsyncadd %s236, %s242
          %s244 = sadd.s32 %s23, %s240
          %s245 = smul.addr %s244, 16
          %s246 = scalar_lea.hbm %s1, %s245
          %s247 = sshll.u32 %s239, 4
          %s248 = int_to_ptr.vmem [resolvable:$true] %s247
          %253 = dma.hbm_to_vmem [thread:$0]  %s246, 64, %s248, %s236, 16, 16, 1
        $region36: #{tpu_custom_call.1} parent=31 // pred_fallthru
          _
      $region32: #{tpu_custom_call.1} parent=5 // pred_fallthru
        _
      %p254 = scmp.le.s32.totalorder 1, %s16
      %p255 = scmp.lt.s32.totalorder %s16, 3
      %p256 = pnand %p254, %p255
      %p257 = pneg %p256
      // Predicated region
      $region37: #{tpu_custom_call.1} parent=5 // pred_check
        _
      $region38: #{tpu_custom_call.1} parent=5 // pred_check_branch
        %259 = sbr.rel (%p256) target = $region40
      $region39: #{tpu_custom_call.1} parent=5 // pred_region
        %s260 = ssub.s32 %s16, 1
        // Predicated region
        $region41: #{tpu_custom_call.1} parent=39 // pred_check
          %p261 = pneg %p54
        $region42: #{tpu_custom_call.1} parent=39 // pred_check_branch
          %263 = sbr.rel (%p261) target = $region44
        $region43: #{tpu_custom_call.1} parent=39 // pred_region
          %264 = dma.done [#allocation5], 32
        $region44: #{tpu_custom_call.1} parent=39 // pred_fallthru
          _
        %s265 = sand.u32 %s21, 1
        %s266 = scalar_lea.sflag [#allocation7], %s265
        %s267 = sand.u32 %s69, 1
        %s268 = smul.addr %s267, 4
        %s269 = scalar_lea.vmem [#allocation6], %s268
        // Predicated region
        $region45: #{tpu_custom_call.1} parent=39 // pred_check
          %p270 = pneg %p82
        $region46: #{tpu_custom_call.1} parent=39 // pred_check_branch
          %272 = sbr.rel (%p270) target = $region48
        $region47: #{tpu_custom_call.1} parent=39 // pred_region
          %273 = dma.done %s266, 64
        $region48: #{tpu_custom_call.1} parent=39 // pred_fallthru
          _
        // Predicated region
        $region49: #{tpu_custom_call.1} parent=39 // pred_check
          %p274 = pneg %p103
        $region50: #{tpu_custom_call.1} parent=39 // pred_check_branch
          %276 = sbr.rel (%p274) target = $region52
        $region51: #{tpu_custom_call.1} parent=39 // pred_region
          %277 = dma.done [#allocation7], 256
        $region52: #{tpu_custom_call.1} parent=39 // pred_fallthru
          _
        // Predicated region
        $region53: #{tpu_custom_call.1} parent=39 // pred_check
          %p278 = pneg %p124
        $region54: #{tpu_custom_call.1} parent=39 // pred_check_branch
          %280 = sbr.rel (%p278) target = $region56
        $region55: #{tpu_custom_call.1} parent=39 // pred_region
          %281 = dma.done [#allocation10], 256
        $region56: #{tpu_custom_call.1} parent=39 // pred_fallthru
          _
        %p282 = pneg %p54
        %p283 = pneg %p51
        %s284 = sand.u32 %s21, 1
        %s285 = scalar_lea.sflag [#allocation7], %s284
        %s286 = sand.u32 %s69, 1
        %s287 = smul.addr %s286, 4
        %s288 = scalar_lea.vmem [#allocation6], %s287
        %p289 = pneg %p82
        %p290 = pneg %p79
        %p291 = pneg %p103
        %p292 = pneg %p100
        %p293 = pneg %p124
        %p294 = pneg %p121
        %p295 = pneg %p145
        %p296 = pneg %p142
        %p297 = pneg %p171
        %p298 = pneg %p168
        %p299 = scmp.lt.s32.totalorder %s25, 0
        %s300 = scalar_select %p299, %s25, 0
        %s301 = smul.addr %s300, 4
        %s302 = scalar_lea.vmem %s5, %s301
        %s303 = smul.u32 4, %s26
        %p304 = scmp.lt.s32.totalorder %s25, 0
        %s305 = scalar_select %p304, %s25, 0
        %s306 = smul.addr %s305, 4
        %s307 = scalar_lea.vmem %s5, %s306
        %p309 = scmp.eq.s32.totalorder %s26, 0
        // Predicated region
        $region57: #{tpu_custom_call.1} parent=39 // pred_check
          %p310 = pneg %p309
        $region58: #{tpu_custom_call.1} parent=39 // pred_check_branch
          %312 = sbr.rel (%p310) target = $region60
        $region59: #{tpu_custom_call.1} parent=39 // pred_region
          %v313 = vld [vmem:[#allocation4] sm:$0x3]
          %v314 = vpack.c.bf16 %v313, %v313
          %v315 = vld [vmem:[#allocation8] sm:$0xf]
          %v316 = vld [vmem:[#allocation8 + $0x4] sm:$0xf]
          %v317 = vld [vmem:[#allocation8 + $0x8] sm:$0xf]
          %v318 = vld [vmem:[#allocation8 + $0xc] sm:$0xf]
          %v323 = vunpack.c.l.b16 %v315
          %v324 = vunpack.c.l.b16 %v316
          %v325 = vunpack.c.l.b16 %v317
          %v326 = vunpack.c.l.b16 %v318
          %v327 = vpack.c.b16 %v324, %v323
          %v328 = vpack.c.b16 %v326, %v325
          %vm331 = vcmask 261120
          %v333 = vsel %vm331, %v314, 0
          %335 = vmatprep.subr.bf16.mxu0 0
          %336 = vmatpush1.bf16.msra.mxu0 %v327
          %337 = vmatprep.subr.bf16.mxu0 0
          %338 = vmatpush1.bf16.msra.mxu0 %v328
          %339 = vmatprep.subr.bf16.mxu0 0
          %340 = vmatpush1.bf16.msra.mxu0 0
          %341 = vmatprep.subr.bf16.mxu0 0
          %342 = vmatpush1.bf16.msra.mxu0 0
          %343 = vmatprep.subr.bf16.mxu0 0
          %344 = vmatpush1.bf16.msra.mxu0 0
          %345 = vmatprep.subr.bf16.mxu0 0
          %346 = vmatpush1.bf16.msra.mxu0 0
          %347 = vmatprep.subr.bf16.mxu0 0
          %348 = vmatpush1.bf16.msra.mxu0 0
          %349 = vmatprep.subr.bf16.mxu0 0
          %350 = vmatpush1.bf16.msra.mxu0 0
          %351 = vmatprep.subr.bf16.mxu0 0
          %352 = vmatpush1.bf16.msra.mxu0 0
          %353 = vmatprep.subr.bf16.mxu0 0
          %354 = vmatpush1.bf16.msra.mxu0 0
          %355 = vmatprep.subr.bf16.mxu0 0
          %356 = vmatpush1.bf16.msra.mxu0 0
          %357 = vmatprep.subr.bf16.mxu0 0
          %358 = vmatpush1.bf16.msra.mxu0 0
          %359 = vmatprep.subr.bf16.mxu0 0
          %360 = vmatpush1.bf16.msra.mxu0 0
          %361 = vmatprep.subr.bf16.mxu0 0
          %362 = vmatpush1.bf16.msra.mxu0 0
          %363 = vmatprep.subr.bf16.mxu0 0
          %364 = vmatpush1.bf16.msra.mxu0 0
          %365 = vmatprep.subr.bf16.mxu0 0
          %366 = vmatpush1.bf16.msra.mxu0 0
          %367 = vmatprep.mubr.bf16.mxu0 0
          %368 = vmatmul.mubr.bf16.gmra.mrb[0].mxu0 %v333
          %v369 = vpop.f32.mrb[0].mxu0
          %v370 = vadd.f32 0.0, %v369
          %v371 = vpop.f32.mrb[0].mxu0
          %v372 = vpop.f32.mrb[0].mxu0
          %v373 = vpop.f32.mrb[0].mxu0
          %374 = vdwg.mxu0
          %vm375 = vcmask 254976
          %376 = vst.msk [vmem:[#allocation3] sm:$0x3] %vm375, %v370
        $region60: #{tpu_custom_call.1} parent=39 // pred_fallthru
          _
        %v377 = vld [vmem:[%s269] sm:$0x1]
        %v378 = vld [vmem:[%s269 + $0x1] sm:$0x1]
        %v379 = vld [vmem:[%s269 + $0x2] sm:$0x1]
        %v380 = vld [vmem:[%s269 + $0x3] sm:$0x1]
        %v381 = vld [vmem:[#allocation9] sm:$0xf]
        %v382 = vld [vmem:[#allocation9 + $0x4] sm:$0xf]
        %v383 = vld [vmem:[#allocation9 + $0x8] sm:$0xf]
        %v384 = vld [vmem:[#allocation9 + $0xc] sm:$0xf]
        %v389 = vcombine.low %v377, %v378
        %v390 = vcombine.low %v379, %v380
        %v392 = vunpack.c.l.s4 1966171168
        %v393 = vunpack.c.0.s8 %v392
        %v394 = vlaneseq
        %v395 = vshrl.u32 %v394, 7
        %v396 = vsub.s32 %v393, %v395
        %v397 = vrot.slane %v389, %v396
        %v399 = vunpack.c.l.s4 1966171168
        %v400 = vunpack.c.0.s8 %v399
        %v401 = vlaneseq
        %v402 = vshrl.u32 %v401, 7
        %v403 = vsub.s32 %v400, %v402
        %v404 = vrot.slane %v390, %v403
        %v405 = vcombine.low %v397, %v404
        %v407 = vunpack.c.l.s4 1966171168
        %v408 = vunpack.c.0.s8 %v407
        %v409 = vlaneseq
        %v410 = vshrl.u32 %v409, 7
        %v411 = vsub.s32 %v408, %v410
        %v412 = vrot.slane %v405, %v411
        %v417 = vunpack.c.l.b16 %v381
        %v418 = vunpack.c.l.b16 %v382
        %v419 = vunpack.c.l.b16 %v383
        %v420 = vunpack.c.l.b16 %v384
        %v421 = vpack.c.b16 %v418, %v417
        %v422 = vpack.c.b16 %v420, %v419
        %vm425 = vcmask 261120
        %v427 = vsel %vm425, %v412, 0
        %429 = vmatprep.subr.bf16.mxu0 0
        %430 = vmatpush1.bf16.msra.mxu0 %v421
        %431 = vmatprep.subr.bf16.mxu0 0
        %432 = vmatpush1.bf16.msra.mxu0 %v422
        %433 = vmatprep.subr.bf16.mxu0 0
        %434 = vmatpush1.bf16.msra.mxu0 0
        %435 = vmatprep.subr.bf16.mxu0 0
        %436 = vmatpush1.bf16.msra.mxu0 0
        %437 = vmatprep.subr.bf16.mxu0 0
        %438 = vmatpush1.bf16.msra.mxu0 0
        %439 = vmatprep.subr.bf16.mxu0 0
        %440 = vmatpush1.bf16.msra.mxu0 0
        %441 = vmatprep.subr.bf16.mxu0 0
        %442 = vmatpush1.bf16.msra.mxu0 0
        %443 = vmatprep.subr.bf16.mxu0 0
        %444 = vmatpush1.bf16.msra.mxu0 0
        %445 = vmatprep.subr.bf16.mxu0 0
        %446 = vmatpush1.bf16.msra.mxu0 0
        %447 = vmatprep.subr.bf16.mxu0 0
        %448 = vmatpush1.bf16.msra.mxu0 0
        %449 = vmatprep.subr.bf16.mxu0 0
        %450 = vmatpush1.bf16.msra.mxu0 0
        %451 = vmatprep.subr.bf16.mxu0 0
        %452 = vmatpush1.bf16.msra.mxu0 0
        %453 = vmatprep.subr.bf16.mxu0 0
        %454 = vmatpush1.bf16.msra.mxu0 0
        %455 = vmatprep.subr.bf16.mxu0 0
        %456 = vmatpush1.bf16.msra.mxu0 0
        %457 = vmatprep.subr.bf16.mxu0 0
        %458 = vmatpush1.bf16.msra.mxu0 0
        %459 = vmatprep.subr.bf16.mxu0 0
        %460 = vmatpush1.bf16.msra.mxu0 0
        %461 = vmatprep.mubr.bf16.mxu0 0
        %462 = vmatmul.mubr.bf16.gmra.mrb[0].mxu0 %v427
        %v463 = vpop.f32.mrb[0].mxu0
        %v464 = vadd.f32 0.0, %v463
        %v465 = vpop.f32.mrb[0].mxu0
        %v466 = vpop.f32.mrb[0].mxu0
        %v467 = vpop.f32.mrb[0].mxu0
        %468 = vdwg.mxu0
        %v470 = vcombine.high %v464, %v464
        %v472 = vunpack.c.l.s4 1983009808
        %v473 = vunpack.c.0.s8 %v472
        %v474 = vlaneseq
        %v475 = vshrl.u32 %v474, 7
        %v476 = vsub.s32 %v473, %v475
        %v477 = vrot.slane %v464, %v476
        %v479 = vunpack.c.l.s4 1983009808
        %v480 = vunpack.c.0.s8 %v479
        %v481 = vlaneseq
        %v482 = vshrl.u32 %v481, 7
        %v483 = vsub.s32 %v480, %v482
        %v484 = vrot.slane %v470, %v483
        %v485 = vcombine.high %v477, %v477
        %v486 = vcombine.high %v484, %v484
        %v491 = vld [vmem:[#allocation3] sm:$0x3]
        %v492 = vadd.f32 %v477, %v491
        %v493 = vadd.f32 %v485, %v491
        %v494 = vadd.f32 %v484, %v491
        %v495 = vadd.f32 %v486, %v491
        %v496 = vtanh.pop %v492
        %v497 = vtanh.pop %v493
        %v498 = vtanh.pop %v494
        %v499 = vtanh.pop %v495
        %v500 = vld [vmem:[%s4] sm:$0x1]
        %v502 = vlaneseq
        %v503 = vshrl.u32 %v502, 7
        %v504 = vsub.s32 0, %v503
        %v505 = vrot.slane %v500, %v504
        %v507 = vmul.f32 %v496, %v505
        %v508 = vmul.f32 %v497, %v505
        %v509 = vmul.f32 %v498, %v505
        %v510 = vmul.f32 %v499, %v505
        %vm511 = vcmask 254976
        %v512 = vsel %vm511, %v507, 0.0
        %513 = vadd.xlane.f32.xlu0 %v512
        %v514 = vpop.xlane.xlu0 %513
        %v515 = vsel %vm511, %v508, 0.0
        %516 = vadd.xlane.f32.xlu0 %v515
        %v517 = vpop.xlane.xlu0 %516
        %v518 = vsel %vm511, %v509, 0.0
        %519 = vadd.xlane.f32.xlu0 %v518
        %v520 = vpop.xlane.xlu0 %519
        %v521 = vsel %vm511, %v510, 0.0
        %522 = vadd.xlane.f32.xlu0 %v521
        %v523 = vpop.xlane.xlu0 %522
        %v528 = vlaneseq
        %v529 = vand.u32 %v528, 127
        %v530 = vlaneseq
        %v531 = vshrl.u32 %v530, 7
        %v532 = vsub.s32 %v529, %v531
        %v533 = vrot.slane %v514, %v532
        %v534 = vlaneseq
        %v535 = vshrl.u32 %v534, 7
        %v536 = vsub.s32 %v529, %v535
        %v537 = vrot.slane %v517, %v536
        %v538 = vlaneseq
        %v539 = vshrl.u32 %v538, 7
        %v540 = vsub.s32 %v529, %v539
        %v541 = vrot.slane %v520, %v540
        %v542 = vlaneseq
        %v543 = vshrl.u32 %v542, 7
        %v544 = vsub.s32 %v529, %v543
        %v545 = vrot.slane %v523, %v544
        %vm546 = vcmask 1041409
        %v547 = vsel %vm546, %v537, %v533
        %vm548 = vcmask 1042434
        %v549 = vsel %vm548, %v541, %v547
        %vm550 = vcmask 1043459
        %v551 = vsel %vm550, %v545, %v549
        %s553 = smul.u32 %s26, 4
        %s554 = scalar_lea.vmem [#allocation2], %s553
        %vm555 = vcmask 11264
        %556 = vst.msk [vmem:[%s554] sm:$0xf] %vm555, %v551
        %p557 = scmp.eq.s32.totalorder %s26, 1
        // Predicated region
        $region61: #{tpu_custom_call.1} parent=39 // pred_check
          %p558 = pneg %p557
        $region62: #{tpu_custom_call.1} parent=39 // pred_check_branch
          %560 = sbr.rel (%p558) target = $region64
        $region63: #{tpu_custom_call.1} parent=39 // pred_region
          %v561 = vld [vmem:[#allocation2] sm:$0xf]
          %v562 = vld [vmem:[#allocation2 + $0x4] sm:$0xf]
          %v563 = vsel %vm555, %v561, -inf
          %v564 = vsel %vm555, %v562, -inf
          %v565 = vmax.f32 %v563, %v564
          %v566 = vrot.slane %v565, 4
          %v567 = vmax.f32 %v565, %v566
          %v568 = vrot.slane %v567, 2
          %v569 = vmax.f32 %v567, %v568
          %v570 = vrot.slane %v569, 1
          %v571 = vmax.f32 %v569, %v570
          %v572 = vsub.f32 %v561, %v571
          %v573 = vsub.f32 %v562, %v571
          %v574 = vmul.f32 %v572, 1.442695
          %v575 = vpow.pop %v574
          %v576 = vmul.f32 %v573, 1.442695
          %v577 = vpow.pop %v576
          %v578 = vsel %vm555, %v575, 0.0
          %v579 = vsel %vm555, %v577, 0.0
          %v580 = vadd.f32 %v578, %v579
          %v581 = vrot.slane %v580, 4
          %v582 = vadd.f32 %v580, %v581
          %v583 = vrot.slane %v582, 2
          %v584 = vadd.f32 %v582, %v583
          %v585 = vrot.slane %v584, 1
          %v586 = vadd.f32 %v584, %v585
          %v587 = vrcp.pop %v586
          %v588 = vmul.f32 %v575, %v587
          %v589 = vmul.f32 %v577, %v587
          %590 = vst.msk [vmem:[%s307] sm:$0xf] %vm555, %v588
          %591 = vst.msk [vmem:[%s307 + $0x4] sm:$0xf] %vm555, %v589
        $region64: #{tpu_custom_call.1} parent=39 // pred_fallthru
          _
        %p592 = scmp.lt.s32.totalorder %s25, 0
        %s593 = scalar_select %p592, %s25, 0
        %s594 = smul.addr %s593, 4
        %s595 = scalar_lea.vmem %s5, %s594
        // Predicated region
        $region65: #{tpu_custom_call.1} parent=39 // pred_check
          %p596 = pneg %p168
        $region66: #{tpu_custom_call.1} parent=39 // pred_check_branch
          %598 = sbr.rel (%p596) target = $region68
        $region67: #{tpu_custom_call.1} parent=39 // pred_region
          _
        $region68: #{tpu_custom_call.1} parent=39 // pred_fallthru
          _
        // Predicated region
        $region69: #{tpu_custom_call.1} parent=39 // pred_check
          %p599 = pneg %p168
        $region70: #{tpu_custom_call.1} parent=39 // pred_check_branch
          %601 = sbr.rel (%p599) target = $region72
        $region71: #{tpu_custom_call.1} parent=39 // pred_region
          %p602 = scmp.lt.s32.totalorder %s25, 0
          %s603 = scalar_select %p602, %s25, 0
          %s604 = smul.addr %s603, 4
          %s605 = scalar_lea.vmem %s5, %s604
        $region72: #{tpu_custom_call.1} parent=39 // pred_fallthru
          _
      $region40: #{tpu_custom_call.1} parent=5 // pred_fallthru
        _
      %p606 = scmp.le.s32.totalorder 2, %s16
      // Predicated region
      $region73: #{tpu_custom_call.1} parent=5 // pred_check
        %p607 = pneg %p606
      $region74: #{tpu_custom_call.1} parent=5 // pred_check_branch
        %609 = sbr.rel (%p607) target = $region76
      $region75: #{tpu_custom_call.1} parent=5 // pred_region
        %s610 = ssub.s32 %s16, 2
      $region76: #{tpu_custom_call.1} parent=5 // pred_fallthru
        _
    $region6: #{tpu_custom_call.1} parent=1 // loop_footer
      %s20 = sadd.s32 1, %s16
    $region7: #{tpu_custom_call.1} parent=1 // loop_footer_branch
      %15 = sbr.rel target = $region3
    $region8: #{tpu_custom_call.1} parent=1 // loop_exit
      _
    %611 = vsyncpa [#allocation5], 1
    %s612 = scalar_lea.sflag [#allocation5], 1
    %613 = vsyncpa %s612, 1
    %614 = vsyncpa [#allocation7], 1
    %s615 = scalar_lea.sflag [#allocation7], 1
    %616 = vsyncpa %s615, 1
    %617 = vsyncpa [#allocation10], 1

</llo_original>
